<compile_context>
chip_gen: v7x
topology: tpu7x:2x2x1
jax: 0.10.0
libtpu: 0.0.40
codegen_flags: <defaults>
</compile_context>

<pallas_src>
import jax
import jax.numpy as jnp
from jax.experimental import pallas as pl
from jax.experimental.pallas import tpu as pltpu

# ----------------------------- parameters -----------------------------------
PARAMS = dict(
    channels=1,        # the module's .view() trick is only consistent for channels == 1
    img_size=16,
    n_classes=10,
    batch_size=2,
)

IN_DIM = PARAMS["channels"] * PARAMS["img_size"] ** 2 + PARAMS["n_classes"]   # 266
IN_PAD = 272                      # 266 features + 1 bias col, rounded up to 16
H1, H2, OUT = 512, 256, 1
TILE_N_MAX = 256                  # batch tile for the streaming (large-N) path


def _round_up(n, m):
    return ((n + m - 1) // m) * m


# ------------------------------- kernel --------------------------------------
def _disc_kernel(x_ref, w1_ref, w2_ref, tail_ref, o_ref):
    # x:    (tile_n, 272) bf16 -- cols [0:266] features, col 266 == 1.0 (bias hook), rest 0
    # w1:   (272, 512) bf16 -- row 266 carries b1, rows 267.. are zero
    # w2:   (512, 256) bf16
    # tail: (3, 256)  f32  -- row0 = b2, row1 = w3 (as a row), row2[0] = b3
    h1 = jnp.dot(x_ref[...], w1_ref[...],
                 preferred_element_type=jnp.float32)            # b1 folded in
    h1 = jnp.maximum(h1, 0.2 * h1)                              # LeakyReLU(0.2)

    h2 = jnp.dot(h1.astype(jnp.bfloat16), w2_ref[...],
                 preferred_element_type=jnp.float32) + tail_ref[0:1, :]
    h2 = jnp.maximum(h2, 0.2 * h2)                              # LeakyReLU(0.2)

    # Final (N,256) @ (256,1) layer on the VPU/XLU instead of an N=1 MXU matmul.
    w3_row = tail_ref[1:2, :]                                   # (1, 256)
    b3 = tail_ref[2:3, 0:1]                                     # (1, 1)
    out = jnp.sum(h2 * w3_row, axis=-1, keepdims=True) + b3
    o_ref[...] = out.astype(o_ref.dtype)


@jax.jit
def discriminator_apply(x, w1p, w2p, tail):
    """x: (N, IN_PAD) pre-glued, lane-padded bf16 input. Returns (N, 1) validity."""
    n = x.shape[0]
    # tile the batch: small N -> a single tile; large N -> stream 256-row blocks
    tile_n = min(TILE_N_MAX, _round_up(n, 8))
    n_pad = _round_up(n, tile_n)
    if n_pad != n:
        x = jnp.concatenate(
            [x, jnp.zeros((n_pad - n, IN_PAD), x.dtype)], axis=0)
    nb = n_pad // tile_n

    flops = 2 * n_pad * (IN_PAD * H1 + H1 * H2 + H2)
    bytes_accessed = (x.size * 2 + w1p.size * 2 + w2p.size * 2
                      + tail.size * 4 + n_pad * OUT * 4)

    out = pl.pallas_call(
        _disc_kernel,
        out_shape=jax.ShapeDtypeStruct((n_pad, OUT), jnp.float32),
        grid=(nb,),
        in_specs=[
            pl.BlockSpec((tile_n, IN_PAD), lambda i: (i, 0)),   # x streams per tile
            pl.BlockSpec((IN_PAD, H1), lambda i: (0, 0)),       # weights stay resident
            pl.BlockSpec((H1, H2), lambda i: (0, 0)),
            pl.BlockSpec((3, H2), lambda i: (0, 0)),
        ],
        out_specs=pl.BlockSpec((tile_n, OUT), lambda i: (i, 0)),
        cost_estimate=pl.CostEstimate(
            flops=flops, transcendentals=0, bytes_accessed=bytes_accessed),
        compiler_params=pltpu.CompilerParams(
            dimension_semantics=("arbitrary",),   # keep single-TC on v7x (mem-bound)
            vmem_limit_bytes=8 << 20),
    )(x, w1p, w2p, tail)
    return out[:n]


def make_disc_input(img, labels):
    """Reproduce the module's cat/view trick exactly:
       cat(img.view(S*S,B), labels.view(C,B), 0).view(B, S*S+C)
       == concat(img.flatten(), labels.flatten()).reshape(B, 266)
    then pad to 272 lanes with a constant-1.0 column at 266 (folded b1), bf16."""
    b = img.shape[0]
    flat = jnp.concatenate([img.reshape(-1), labels.reshape(-1)])
    x = flat.reshape(b, IN_DIM)
    pad = jnp.zeros((b, IN_PAD - IN_DIM), jnp.float32).at[:, 0].set(1.0)
    return jnp.concatenate([x, pad], axis=1).astype(jnp.bfloat16)


def discriminator_forward(img, labels, prepped):
    # NOTE: in GAN training, build make_disc_input() for the real and fake
    # batches, stack them, and make ONE discriminator_apply call so the
    # ~0.55 MB of bf16 weights is DMA'd from HBM once per step instead of once
    # per call (per-call dispatch + weight DMA dominates at small batch).
    return discriminator_apply(make_disc_input(img, labels), *prepped)


# ----------------------------- param init ------------------------------------
def init_params(key):
    """Deterministic init mimicking torch.nn.Linear default U(-1/sqrt(fan_in))."""
    def linear(key, fan_in, fan_out):
        kw, kb = jax.random.split(key)
        bound = 1.0 / jnp.sqrt(fan_in)
        w = jax.random.uniform(kw, (fan_in, fan_out), jnp.float32, -bound, bound)
        b = jax.random.uniform(kb, (fan_out,), jnp.float32, -bound, bound)
        return w, b

    k1, k2, k3 = jax.random.split(key, 3)
    w1, b1 = linear(k1, IN_DIM, H1)
    w2, b2 = linear(k2, H1, H2)
    w3, b3 = linear(k3, H2, OUT)
    return (w1, b1, w2, b2, w3, b3)


def prepare_params(params_f32):
    """Pack plain f32 (in,out) Linear params into the kernel's bf16/packed layout."""
    w1, b1, w2, b2, w3, b3 = params_f32
    w1p = jnp.zeros((IN_PAD, H1), jnp.float32)
    w1p = w1p.at[:IN_DIM, :].set(w1)
    w1p = w1p.at[IN_DIM, :].set(b1)          # bias row, hit by the constant-1 column
    w1p = w1p.astype(jnp.bfloat16)
    w2p = w2.astype(jnp.bfloat16)
    tail = jnp.zeros((3, H2), jnp.float32)
    tail = tail.at[0, :].set(b2)
    tail = tail.at[1, :].set(w3[:, 0])
    tail = tail.at[2, 0].set(b3[0])
    return w1p, w2p, tail


# ------------------------------ references -----------------------------------
def _ref_forward_f32(img, labels, params_f32):
    """Pure-JAX full-f32 reference of the original module semantics."""
    b = img.shape[0]
    w1, b1, w2, b2, w3, b3 = params_f32
    x = jnp.concatenate([img.reshape(-1), labels.reshape(-1)]).reshape(b, IN_DIM)
    h1 = x @ w1 + b1
    h1 = jnp.where(h1 > 0, h1, 0.2 * h1)
    h2 = h1 @ w2 + b2
    h2 = jnp.where(h2 > 0, h2, 0.2 * h2)
    return h2 @ w3 + b3


def _ref_forward_prepped(img, labels, prepped):
    """Pure-JAX reference of the exact (bf16-weight/input) math the kernel performs."""
    w1p, w2p, tail = prepped
    x = make_disc_input(img, labels)
    h1 = jnp.dot(x, w1p, preferred_element_type=jnp.float32)
    h1 = jnp.maximum(h1, 0.2 * h1)
    h2 = jnp.dot(h1.astype(jnp.bfloat16), w2p,
                 preferred_element_type=jnp.float32) + tail[0:1, :]
    h2 = jnp.maximum(h2, 0.2 * h2)
    return jnp.sum(h2 * tail[1:2, :], axis=-1, keepdims=True) + tail[2, 0]


# --------------------------------- main ---------------------------------------
if __name__ == "__main__":
    key = jax.random.PRNGKey(0)
    k_img, k_lab, k_par, k_img2, k_lab2 = jax.random.split(key, 5)

    B, C, S = PARAMS["batch_size"], PARAMS["channels"], PARAMS["img_size"]
    img = jax.random.normal(k_img, (B, C, S, S), jnp.float32)          # NCHW
    lab_idx = jax.random.randint(k_lab, (B,), 0, PARAMS["n_classes"])
    labels = jax.nn.one_hot(lab_idx, PARAMS["n_classes"], dtype=jnp.float32)

    params_f32 = init_params(k_par)
    prepped = prepare_params(params_f32)

    out = discriminator_forward(img, labels, prepped)
    out = jax.block_until_ready(out)
    assert out.shape == (B, OUT), out.shape

    # tight check against the exact math the kernel performs (bf16 weights/input)
    ref_bf16 = _ref_forward_prepped(img, labels, prepped)
    assert jnp.allclose(out, ref_bf16, atol=2e-3, rtol=2e-3), (out, ref_bf16)

    # loose check against the original full-f32 module semantics
    ref_f32 = _ref_forward_f32(img, labels, params_f32)
    assert jnp.allclose(out, ref_f32, atol=5e-2, rtol=5e-2), (out, ref_f32)

    # demo of amortizing weight DMA + dispatch: two "discriminator calls"
    # (e.g. real + fake GAN batches) fused into a single pallas_call / single
    # weight load — the recommended way to use this kernel inside a train step.
    img2 = jax.random.normal(k_img2, (B, C, S, S), jnp.float32)
    lab2_idx = jax.random.randint(k_lab2, (B,), 0, PARAMS["n_classes"])
    labels2 = jax.nn.one_hot(lab2_idx, PARAMS["n_classes"], dtype=jnp.float32)
    x_stacked = jnp.concatenate(
        [make_disc_input(img, labels), make_disc_input(img2, labels2)], axis=0)
    out_stacked = jax.block_until_ready(discriminator_apply(x_stacked, *prepped))
    out2 = discriminator_forward(img2, labels2, prepped)
    assert jnp.allclose(out_stacked[:B], out, atol=1e-5), (out_stacked[:B], out)
    assert jnp.allclose(out_stacked[B:], out2, atol=1e-5), (out_stacked[B:], out2)

    # sanity of the streaming (large-batch, grid > 1) path against the small path
    big = 600                                   # -> tile_n=256, grid=(3,), padded rows
    xs = jnp.tile(make_disc_input(img, labels), (big // B, 1))
    out_big = jax.block_until_ready(discriminator_apply(xs, *prepped))
    assert out_big.shape == (big, OUT)
    assert jnp.allclose(out_big[:B], out, atol=1e-5), (out_big[:B], out)

    print("KERNEL_OK")
</pallas_src>

<mosaic_0001>
module attributes {stable_mosaic.version = 11 : i64} {
  func.func @_disc_kernel(%arg0: i32, %arg1: memref<8x272xbf16, #tpu.memory_space<vmem>>, %arg2: memref<272x512xbf16, #tpu.memory_space<vmem>>, %arg3: memref<512x256xbf16, #tpu.memory_space<vmem>>, %arg4: memref<3x256xf32, #tpu.memory_space<vmem>>, %arg5: memref<8x1xf32, #tpu.memory_space<vmem>>) attributes {dimension_semantics = [#tpu.dimension_semantics<arbitrary>], iteration_bounds = array<i64: 1>, scalar_prefetch = 0 : i64, scratch_operands = 0 : i64, tpu.core_type = #tpu.core_type<tc>, window_params = [{transform_indices = @transform_0, window_bounds = array<i64: 8, 272>}, {pipeline_mode = #tpu.pipeline_mode<synchronous>, transform_indices = @transform_1, window_bounds = array<i64: 272, 512>}, {pipeline_mode = #tpu.pipeline_mode<synchronous>, transform_indices = @transform_2, window_bounds = array<i64: 512, 256>}, {pipeline_mode = #tpu.pipeline_mode<synchronous>, transform_indices = @transform_3, window_bounds = array<i64: 3, 256>}, {transform_indices = @transform_4, window_bounds = array<i64: 8, 1>}]} {
    %c0 = arith.constant 0 : index
    %c0_0 = arith.constant 0 : index
    %0 = vector.load %arg1[%c0, %c0_0] : memref<8x272xbf16, #tpu.memory_space<vmem>>, vector<8x272xbf16>
    %c0_1 = arith.constant 0 : index
    %c0_2 = arith.constant 0 : index
    %1 = vector.load %arg2[%c0_1, %c0_2] : memref<272x512xbf16, #tpu.memory_space<vmem>>, vector<272x512xbf16>
    %cst = arith.constant dense<0.000000e+00> : vector<8x512xf32>
    %2 = tpu.matmul %0, %1, %cst {dimension_numbers = #tpu.dot_dimension_numbers<[1], [0], [0], [1], [0, 0, 1, 1], [], []>} : vector<8x272xbf16>, vector<272x512xbf16>, vector<8x512xf32> -> vector<8x512xf32>
    %cst_3 = arith.constant 2.000000e-01 : f32
    %3 = vector.broadcast %cst_3 : f32 to vector<8x512xf32>
    %4 = arith.mulf %3, %2 : vector<8x512xf32>
    %5 = arith.maximumf %2, %4 : vector<8x512xf32>
    %6 = arith.truncf %5 : vector<8x512xf32> to vector<8x512xbf16>
    %c0_4 = arith.constant 0 : index
    %c0_5 = arith.constant 0 : index
    %7 = vector.load %arg3[%c0_4, %c0_5] : memref<512x256xbf16, #tpu.memory_space<vmem>>, vector<512x256xbf16>
    %cst_6 = arith.constant dense<0.000000e+00> : vector<8x256xf32>
    %8 = tpu.matmul %6, %7, %cst_6 {dimension_numbers = #tpu.dot_dimension_numbers<[1], [0], [0], [1], [0, 0, 1, 1], [], []>} : vector<8x512xbf16>, vector<512x256xbf16>, vector<8x256xf32> -> vector<8x256xf32>
    %c0_7 = arith.constant 0 : index
    %c0_8 = arith.constant 0 : index
    %9 = vector.load %arg4[%c0_7, %c0_8] : memref<3x256xf32, #tpu.memory_space<vmem>>, vector<1x256xf32>
    %10 = vector.broadcast %9 : vector<1x256xf32> to vector<8x256xf32>
    %11 = arith.addf %8, %10 : vector<8x256xf32>
    %cst_9 = arith.constant 2.000000e-01 : f32
    %12 = vector.broadcast %cst_9 : f32 to vector<8x256xf32>
    %13 = arith.mulf %12, %11 : vector<8x256xf32>
    %14 = arith.maximumf %11, %13 : vector<8x256xf32>
    %c1 = arith.constant 1 : index
    %c0_10 = arith.constant 0 : index
    %15 = vector.load %arg4[%c1, %c0_10] : memref<3x256xf32, #tpu.memory_space<vmem>>, vector<1x256xf32>
    %c2 = arith.constant 2 : index
    %c0_11 = arith.constant 0 : index
    %16 = vector.load %arg4[%c2, %c0_11] : memref<3x256xf32, #tpu.memory_space<vmem>>, vector<1x1xf32>
    %17 = vector.broadcast %15 : vector<1x256xf32> to vector<8x256xf32>
    %18 = arith.mulf %14, %17 : vector<8x256xf32>
    %cst_12 = arith.constant dense<0.000000e+00> : vector<8xf32>
    %19 = vector.multi_reduction <add>, %18, %cst_12 [1] : vector<8x256xf32> to vector<8xf32>
    %20 = vector.shape_cast %19 : vector<8xf32> to vector<8x1xf32>
    %21 = vector.broadcast %16 : vector<1x1xf32> to vector<8x1xf32>
    %22 = arith.addf %20, %21 : vector<8x1xf32>
    %c0_13 = arith.constant 0 : index
    %c0_14 = arith.constant 0 : index
    %23 = vector.load %arg5[%c0_13, %c0_14] : memref<8x1xf32, #tpu.memory_space<vmem>>, vector<8x1xf32>
    tpu.vector_store %arg5[%c0_13, %c0_14], %22 {strides = array<i32>} : memref<8x1xf32, #tpu.memory_space<vmem>>, vector<8x1xf32>,
    return
  }
  func.func @transform_0(%arg0: i32) -> (i32, i32) {
    %c0_i32 = arith.constant 0 : i32
    %c0_i32_0 = arith.constant 0 : i32
    return %arg0, %c0_i32 : i32, i32
  }
  func.func @transform_1(%arg0: i32) -> (i32, i32) {
    %c0_i32 = arith.constant 0 : i32
    %c0_i32_0 = arith.constant 0 : i32
    %c0_i32_1 = arith.constant 0 : i32
    return %c0_i32, %c0_i32_0 : i32, i32
  }
  func.func @transform_2(%arg0: i32) -> (i32, i32) {
    %c0_i32 = arith.constant 0 : i32
    %c0_i32_0 = arith.constant 0 : i32
    %c0_i32_1 = arith.constant 0 : i32
    return %c0_i32, %c0_i32_0 : i32, i32
  }
  func.func @transform_3(%arg0: i32) -> (i32, i32) {
    %c0_i32 = arith.constant 0 : i32
    %c0_i32_0 = arith.constant 0 : i32
    %c0_i32_1 = arith.constant 0 : i32
    return %c0_i32, %c0_i32_0 : i32, i32
  }
  func.func @transform_4(%arg0: i32) -> (i32, i32) {
    %c0_i32 = arith.constant 0 : i32
    %c0_i32_0 = arith.constant 0 : i32
    return %arg0, %c0_i32 : i32, i32
  }
}

</mosaic_0001>

<llo_original>
// kernel: discriminator_apply.1
$region0: #{discriminator_apply.1}
  #allocation0 [shape = 'u32[]', space=smem, size = 0x4, offset = 0x4, fixed_abs, tag = 'smem constant byte address 0x4 - core index']
  #allocation1 [shape = 'u32[144,128]{1,0:T(1,128)}', space=vmem, size = 0x12000, scoped, tag = 'internal scratch']
  %s0 = inlined_call_operand.vmem [shape: bf16[8,272], index: 0, kind: input, shape index: {}]
  %s1 = inlined_call_operand.hbm [shape: bf16[272,512], index: 1, kind: input, shape index: {}]
  %s2 = inlined_call_operand.hbm [shape: bf16[512,256], index: 2, kind: input, shape index: {}]
  %s3 = inlined_call_operand.vmem [shape: f32[3,256], index: 3, kind: input, shape index: {}]
  %s4 = inlined_call_operand.vmem [shape: f32[8,1], index: 4, kind: output, shape index: {}]
  %s5 = sld [smem:[#allocation0]]
  $region34: #{discriminator_apply.1} parent=0
    _
  %s7 = ssub.s32 1, %s5
  %s8 = scalar_select 0, %s7, %s5
  $region1: #{discriminator_apply.1} parent=0
    #allocation2 [shape = 'u8[278528]{0}', space=vmem, size = 0x44000, scoped, tag = 'input window, operand 1, single buffered']
    #allocation3 [shape = 's32[1]{0}', space=sflag, size = 0x4, scoped, tag = 'scoped memory for discriminator_apply.1']
    #allocation4 [shape = 'u8[262144]{0}', space=vmem, size = 0x40000, scoped, tag = 'input window, operand 2, single buffered']
    #allocation5 [shape = 's32[1]{0}', space=sflag, size = 0x4, scoped, tag = 'scoped memory for discriminator_apply.1']
    %9 = vsyncpa [#allocation3], 0
    %10 = vsyncpa [#allocation5], 0
    // Predicated region
    $region2: #{discriminator_apply.1} parent=1 // pred_check
      _
    $region3: #{discriminator_apply.1} parent=1 // pred_check_branch
      %12 = sbr.rel (0) target = $region5
    $region4: #{discriminator_apply.1} parent=1 // pred_region
      _
    $region5: #{discriminator_apply.1} parent=1 // pred_fallthru
      _
    // Predicated region
    $region6: #{discriminator_apply.1} parent=1 // pred_check
      _
    $region7: #{discriminator_apply.1} parent=1 // pred_check_branch
      %14 = sbr.rel (0) target = $region9
    $region8: #{discriminator_apply.1} parent=1 // pred_region
      %s16 = ssub.s32 8704, 8704
      %17 = vsyncadd [#allocation3], %s16
      %s18 = sshll.u32 [#allocation2], 4
      %s19 = int_to_ptr.vmem [resolvable:$true] %s18
      %24 = dma.hbm_to_vmem [thread:$0]  %s1, 8704, %s19, [#allocation3], 256, 256, 16
    $region9: #{discriminator_apply.1} parent=1 // pred_fallthru
      _
    // Predicated region
    $region10: #{discriminator_apply.1} parent=1 // pred_check
      _
    $region11: #{discriminator_apply.1} parent=1 // pred_check_branch
      %26 = sbr.rel (0) target = $region13
    $region12: #{discriminator_apply.1} parent=1 // pred_region
      %s28 = ssub.s32 8192, 8192
      %29 = vsyncadd [#allocation5], %s28
      %s30 = sshll.u32 [#allocation4], 4
      %s31 = int_to_ptr.vmem [resolvable:$true] %s30
      %36 = dma.hbm_to_vmem [thread:$0]  %s2, 8192, %s31, [#allocation5], 128, 128, 8
    $region13: #{discriminator_apply.1} parent=1 // pred_fallthru
      _
    // Predicated region
    $region14: #{discriminator_apply.1} parent=1 // pred_check
      _
    $region15: #{discriminator_apply.1} parent=1 // pred_check_branch
      %38 = sbr.rel (0) target = $region17
    $region16: #{discriminator_apply.1} parent=1 // pred_region
      _
    $region17: #{discriminator_apply.1} parent=1 // pred_fallthru
      _
    // Predicated region
    $region18: #{discriminator_apply.1} parent=1 // pred_check
      _
    $region19: #{discriminator_apply.1} parent=1 // pred_check_branch
      %40 = sbr.rel (0) target = $region21
    $region20: #{discriminator_apply.1} parent=1 // pred_region
      %41 = dma.done [#allocation3], 8704
    $region21: #{discriminator_apply.1} parent=1 // pred_fallthru
      _
    // Predicated region
    $region22: #{discriminator_apply.1} parent=1 // pred_check
      _
    $region23: #{discriminator_apply.1} parent=1 // pred_check_branch
      %43 = sbr.rel (0) target = $region25
    $region24: #{discriminator_apply.1} parent=1 // pred_region
      %44 = dma.done [#allocation5], 8192
    $region25: #{discriminator_apply.1} parent=1 // pred_fallthru
      _
    %v46 = vld [vmem:[%s0] sm:$0xff]
    %v47 = vld [vmem:[%s0 + $0x8] sm:$0xf]
    %v48 = vld [vmem:[#allocation2] sm:$0xff]
    %v49 = vld [vmem:[#allocation2 + $0x8] sm:$0xff]
    %v50 = vld [vmem:[#allocation2 + $0x10] sm:$0xff]
    %v51 = vld [vmem:[#allocation2 + $0x18] sm:$0xff]
    %v52 = vld [vmem:[#allocation2 + $0x20] sm:$0xff]
    %v53 = vld [vmem:[#allocation2 + $0x28] sm:$0xff]
    %v54 = vld [vmem:[#allocation2 + $0x30] sm:$0xff]
    %v55 = vld [vmem:[#allocation2 + $0x38] sm:$0xff]
    %v56 = vld [vmem:[#allocation2 + $0x40] sm:$0xff]
    %v57 = vld [vmem:[#allocation2 + $0x48] sm:$0xff]
    %v58 = vld [vmem:[#allocation2 + $0x50] sm:$0xff]
    %v59 = vld [vmem:[#allocation2 + $0x58] sm:$0xff]
    %v60 = vld [vmem:[#allocation2 + $0x60] sm:$0xff]
    %v61 = vld [vmem:[#allocation2 + $0x68] sm:$0xff]
    %v62 = vld [vmem:[#allocation2 + $0x70] sm:$0xff]
    %v63 = vld [vmem:[#allocation2 + $0x78] sm:$0xff]
    %v64 = vld [vmem:[#allocation2 + $0x80] sm:$0xff]
    %v65 = vld [vmem:[#allocation2 + $0x88] sm:$0xff]
    %v66 = vld [vmem:[#allocation2 + $0x90] sm:$0xff]
    %v67 = vld [vmem:[#allocation2 + $0x98] sm:$0xff]
    %v68 = vld [vmem:[#allocation2 + $0xa0] sm:$0xff]
    %v69 = vld [vmem:[#allocation2 + $0xa8] sm:$0xff]
    %v70 = vld [vmem:[#allocation2 + $0xb0] sm:$0xff]
    %v71 = vld [vmem:[#allocation2 + $0xb8] sm:$0xff]
    %v72 = vld [vmem:[#allocation2 + $0xc0] sm:$0xff]
    %v73 = vld [vmem:[#allocation2 + $0xc8] sm:$0xff]
    %v74 = vld [vmem:[#allocation2 + $0xd0] sm:$0xff]
    %v75 = vld [vmem:[#allocation2 + $0xd8] sm:$0xff]
    %v76 = vld [vmem:[#allocation2 + $0xe0] sm:$0xff]
    %v77 = vld [vmem:[#allocation2 + $0xe8] sm:$0xff]
    %v78 = vld [vmem:[#allocation2 + $0xf0] sm:$0xff]
    %v79 = vld [vmem:[#allocation2 + $0xf8] sm:$0xff]
    %v80 = vld [vmem:[#allocation2 + $0x100] sm:$0xff]
    %v81 = vld [vmem:[#allocation2 + $0x108] sm:$0xff]
    %v82 = vld [vmem:[#allocation2 + $0x110] sm:$0xff]
    %v83 = vld [vmem:[#allocation2 + $0x118] sm:$0xff]
    %v84 = vld [vmem:[#allocation2 + $0x120] sm:$0xff]
    %v85 = vld [vmem:[#allocation2 + $0x128] sm:$0xff]
    %v86 = vld [vmem:[#allocation2 + $0x130] sm:$0xff]
    %v87 = vld [vmem:[#allocation2 + $0x138] sm:$0xff]
    %v88 = vld [vmem:[#allocation2 + $0x140] sm:$0xff]
    %v89 = vld [vmem:[#allocation2 + $0x148] sm:$0xff]
    %v90 = vld [vmem:[#allocation2 + $0x150] sm:$0xff]
    %v91 = vld [vmem:[#allocation2 + $0x158] sm:$0xff]
    %v92 = vld [vmem:[#allocation2 + $0x160] sm:$0xff]
    %v93 = vld [vmem:[#allocation2 + $0x168] sm:$0xff]
    %v94 = vld [vmem:[#allocation2 + $0x170] sm:$0xff]
    %v95 = vld [vmem:[#allocation2 + $0x178] sm:$0xff]
    %v96 = vld [vmem:[#allocation2 + $0x180] sm:$0xff]
    %v97 = vld [vmem:[#allocation2 + $0x188] sm:$0xff]
    %v98 = vld [vmem:[#allocation2 + $0x190] sm:$0xff]
    %v99 = vld [vmem:[#allocation2 + $0x198] sm:$0xff]
    %v100 = vld [vmem:[#allocation2 + $0x1a0] sm:$0xff]
    %v101 = vld [vmem:[#allocation2 + $0x1a8] sm:$0xff]
    %v102 = vld [vmem:[#allocation2 + $0x1b0] sm:$0xff]
    %v103 = vld [vmem:[#allocation2 + $0x1b8] sm:$0xff]
    %v104 = vld [vmem:[#allocation2 + $0x1c0] sm:$0xff]
    %v105 = vld [vmem:[#allocation2 + $0x1c8] sm:$0xff]
    %v106 = vld [vmem:[#allocation2 + $0x1d0] sm:$0xff]
    %v107 = vld [vmem:[#allocation2 + $0x1d8] sm:$0xff]
    %v108 = vld [vmem:[#allocation2 + $0x1e0] sm:$0xff]
    %v109 = vld [vmem:[#allocation2 + $0x1e8] sm:$0xff]
    %v110 = vld [vmem:[#allocation2 + $0x1f0] sm:$0xff]
    %v111 = vld [vmem:[#allocation2 + $0x1f8] sm:$0xff]
    %v112 = vld [vmem:[#allocation2 + $0x200] sm:$0xff]
    %v113 = vld [vmem:[#allocation2 + $0x208] sm:$0xff]
    %v114 = vld [vmem:[#allocation2 + $0x210] sm:$0xff]
    %v115 = vld [vmem:[#allocation2 + $0x218] sm:$0xff]
    %v118 = vunpack.c.l.b16 %v46
    %v119 = vunpack.c.h.b16 %v46
    %v120 = vunpack.c.l.b16 %v47
    %v121 = vpack.c.b16 %v118, %v118
    %v122 = vpack.c.b16 %v119, %v119
    %v123 = vpack.c.b16 %v120, %v120
    %v194 = vunpack.c.l.b16 %v48
    %v195 = vunpack.c.h.b16 %v48
    %v196 = vunpack.c.l.b16 %v49
    %v197 = vunpack.c.h.b16 %v49
    %v198 = vunpack.c.l.b16 %v50
    %v199 = vunpack.c.h.b16 %v50
    %v200 = vunpack.c.l.b16 %v51
    %v201 = vunpack.c.h.b16 %v51
    %v202 = vunpack.c.l.b16 %v52
    %v203 = vunpack.c.h.b16 %v52
    %v204 = vunpack.c.l.b16 %v53
    %v205 = vunpack.c.h.b16 %v53
    %v206 = vunpack.c.l.b16 %v54
    %v207 = vunpack.c.h.b16 %v54
    %v208 = vunpack.c.l.b16 %v55
    %v209 = vunpack.c.h.b16 %v55
    %v210 = vunpack.c.l.b16 %v56
    %v211 = vunpack.c.h.b16 %v56
    %v212 = vunpack.c.l.b16 %v57
    %v213 = vunpack.c.h.b16 %v57
    %v214 = vunpack.c.l.b16 %v58
    %v215 = vunpack.c.h.b16 %v58
    %v216 = vunpack.c.l.b16 %v59
    %v217 = vunpack.c.h.b16 %v59
    %v218 = vunpack.c.l.b16 %v60
    %v219 = vunpack.c.h.b16 %v60
    %v220 = vunpack.c.l.b16 %v61
    %v221 = vunpack.c.h.b16 %v61
    %v222 = vunpack.c.l.b16 %v62
    %v223 = vunpack.c.h.b16 %v62
    %v224 = vunpack.c.l.b16 %v63
    %v225 = vunpack.c.h.b16 %v63
    %v226 = vunpack.c.l.b16 %v64
    %v227 = vunpack.c.h.b16 %v64
    %v228 = vunpack.c.l.b16 %v65
    %v229 = vunpack.c.h.b16 %v65
    %v230 = vunpack.c.l.b16 %v66
    %v231 = vunpack.c.h.b16 %v66
    %v232 = vunpack.c.l.b16 %v67
    %v233 = vunpack.c.h.b16 %v67
    %v234 = vunpack.c.l.b16 %v68
    %v235 = vunpack.c.h.b16 %v68
    %v236 = vunpack.c.l.b16 %v69
    %v237 = vunpack.c.h.b16 %v69
    %v238 = vunpack.c.l.b16 %v70
    %v239 = vunpack.c.h.b16 %v70
    %v240 = vunpack.c.l.b16 %v71
    %v241 = vunpack.c.h.b16 %v71
    %v242 = vunpack.c.l.b16 %v72
    %v243 = vunpack.c.h.b16 %v72
    %v244 = vunpack.c.l.b16 %v73
    %v245 = vunpack.c.h.b16 %v73
    %v246 = vunpack.c.l.b16 %v74
    %v247 = vunpack.c.h.b16 %v74
    %v248 = vunpack.c.l.b16 %v75
    %v249 = vunpack.c.h.b16 %v75
    %v250 = vunpack.c.l.b16 %v76
    %v251 = vunpack.c.h.b16 %v76
    %v252 = vunpack.c.l.b16 %v77
    %v253 = vunpack.c.h.b16 %v77
    %v254 = vunpack.c.l.b16 %v78
    %v255 = vunpack.c.h.b16 %v78
    %v256 = vunpack.c.l.b16 %v79
    %v257 = vunpack.c.h.b16 %v79
    %v258 = vunpack.c.l.b16 %v80
    %v259 = vunpack.c.h.b16 %v80
    %v260 = vunpack.c.l.b16 %v81
    %v261 = vunpack.c.h.b16 %v81
    %v262 = vunpack.c.l.b16 %v82
    %v263 = vunpack.c.h.b16 %v82
    %v264 = vunpack.c.l.b16 %v83
    %v265 = vunpack.c.h.b16 %v83
    %v266 = vunpack.c.l.b16 %v84
    %v267 = vunpack.c.h.b16 %v84
    %v268 = vunpack.c.l.b16 %v85
    %v269 = vunpack.c.h.b16 %v85
    %v270 = vunpack.c.l.b16 %v86
    %v271 = vunpack.c.h.b16 %v86
    %v272 = vunpack.c.l.b16 %v87
    %v273 = vunpack.c.h.b16 %v87
    %v274 = vunpack.c.l.b16 %v88
    %v275 = vunpack.c.h.b16 %v88
    %v276 = vunpack.c.l.b16 %v89
    %v277 = vunpack.c.h.b16 %v89
    %v278 = vunpack.c.l.b16 %v90
    %v279 = vunpack.c.h.b16 %v90
    %v280 = vunpack.c.l.b16 %v91
    %v281 = vunpack.c.h.b16 %v91
    %v282 = vunpack.c.l.b16 %v92
    %v283 = vunpack.c.h.b16 %v92
    %v284 = vunpack.c.l.b16 %v93
    %v285 = vunpack.c.h.b16 %v93
    %v286 = vunpack.c.l.b16 %v94
    %v287 = vunpack.c.h.b16 %v94
    %v288 = vunpack.c.l.b16 %v95
    %v289 = vunpack.c.h.b16 %v95
    %v290 = vunpack.c.l.b16 %v96
    %v291 = vunpack.c.h.b16 %v96
    %v292 = vunpack.c.l.b16 %v97
    %v293 = vunpack.c.h.b16 %v97
    %v294 = vunpack.c.l.b16 %v98
    %v295 = vunpack.c.h.b16 %v98
    %v296 = vunpack.c.l.b16 %v99
    %v297 = vunpack.c.h.b16 %v99
    %v298 = vunpack.c.l.b16 %v100
    %v299 = vunpack.c.h.b16 %v100
    %v300 = vunpack.c.l.b16 %v101
    %v301 = vunpack.c.h.b16 %v101
    %v302 = vunpack.c.l.b16 %v102
    %v303 = vunpack.c.h.b16 %v102
    %v304 = vunpack.c.l.b16 %v103
    %v305 = vunpack.c.h.b16 %v103
    %v306 = vunpack.c.l.b16 %v104
    %v307 = vunpack.c.h.b16 %v104
    %v308 = vunpack.c.l.b16 %v105
    %v309 = vunpack.c.h.b16 %v105
    %v310 = vunpack.c.l.b16 %v106
    %v311 = vunpack.c.h.b16 %v106
    %v312 = vunpack.c.l.b16 %v107
    %v313 = vunpack.c.h.b16 %v107
    %v314 = vunpack.c.l.b16 %v108
    %v315 = vunpack.c.h.b16 %v108
    %v316 = vunpack.c.l.b16 %v109
    %v317 = vunpack.c.h.b16 %v109
    %v318 = vunpack.c.l.b16 %v110
    %v319 = vunpack.c.h.b16 %v110
    %v320 = vunpack.c.l.b16 %v111
    %v321 = vunpack.c.h.b16 %v111
    %v322 = vunpack.c.l.b16 %v112
    %v323 = vunpack.c.h.b16 %v112
    %v324 = vunpack.c.l.b16 %v113
    %v325 = vunpack.c.h.b16 %v113
    %v326 = vunpack.c.l.b16 %v114
    %v327 = vunpack.c.h.b16 %v114
    %v328 = vunpack.c.l.b16 %v115
    %v329 = vunpack.c.h.b16 %v115
    %v330 = vpack.c.b16 %v198, %v194
    %v331 = vpack.c.b16 %v199, %v195
    %v332 = vpack.c.b16 %v200, %v196
    %v333 = vpack.c.b16 %v201, %v197
    %v334 = vpack.c.b16 %v206, %v202
    %v335 = vpack.c.b16 %v207, %v203
    %v336 = vpack.c.b16 %v208, %v204
    %v337 = vpack.c.b16 %v209, %v205
    %v338 = vpack.c.b16 %v214, %v210
    %v339 = vpack.c.b16 %v215, %v211
    %v340 = vpack.c.b16 %v216, %v212
    %v341 = vpack.c.b16 %v217, %v213
    %v342 = vpack.c.b16 %v222, %v218
    %v343 = vpack.c.b16 %v223, %v219
    %v344 = vpack.c.b16 %v224, %v220
    %v345 = vpack.c.b16 %v225, %v221
    %v346 = vpack.c.b16 %v230, %v226
    %v347 = vpack.c.b16 %v231, %v227
    %v348 = vpack.c.b16 %v232, %v228
    %v349 = vpack.c.b16 %v233, %v229
    %v350 = vpack.c.b16 %v238, %v234
    %v351 = vpack.c.b16 %v239, %v235
    %v352 = vpack.c.b16 %v240, %v236
    %v353 = vpack.c.b16 %v241, %v237
    %v354 = vpack.c.b16 %v246, %v242
    %v355 = vpack.c.b16 %v247, %v243
    %v356 = vpack.c.b16 %v248, %v244
    %v357 = vpack.c.b16 %v249, %v245
    %v358 = vpack.c.b16 %v254, %v250
    %v359 = vpack.c.b16 %v255, %v251
    %v360 = vpack.c.b16 %v256, %v252
    %v361 = vpack.c.b16 %v257, %v253
    %v362 = vpack.c.b16 %v262, %v258
    %v363 = vpack.c.b16 %v263, %v259
    %v364 = vpack.c.b16 %v264, %v260
    %v365 = vpack.c.b16 %v265, %v261
    %v366 = vpack.c.b16 %v270, %v266
    %v367 = vpack.c.b16 %v271, %v267
    %v368 = vpack.c.b16 %v272, %v268
    %v369 = vpack.c.b16 %v273, %v269
    %v370 = vpack.c.b16 %v278, %v274
    %v371 = vpack.c.b16 %v279, %v275
    %v372 = vpack.c.b16 %v280, %v276
    %v373 = vpack.c.b16 %v281, %v277
    %v374 = vpack.c.b16 %v286, %v282
    %v375 = vpack.c.b16 %v287, %v283
    %v376 = vpack.c.b16 %v288, %v284
    %v377 = vpack.c.b16 %v289, %v285
    %v378 = vpack.c.b16 %v294, %v290
    %v379 = vpack.c.b16 %v295, %v291
    %v380 = vpack.c.b16 %v296, %v292
    %v381 = vpack.c.b16 %v297, %v293
    %v382 = vpack.c.b16 %v302, %v298
    %v383 = vpack.c.b16 %v303, %v299
    %v384 = vpack.c.b16 %v304, %v300
    %v385 = vpack.c.b16 %v305, %v301
    %v386 = vpack.c.b16 %v310, %v306
    %v387 = vpack.c.b16 %v311, %v307
    %v388 = vpack.c.b16 %v312, %v308
    %v389 = vpack.c.b16 %v313, %v309
    %v390 = vpack.c.b16 %v318, %v314
    %v391 = vpack.c.b16 %v319, %v315
    %v392 = vpack.c.b16 %v320, %v316
    %v393 = vpack.c.b16 %v321, %v317
    %v394 = vpack.c.b16 %v326, %v322
    %v395 = vpack.c.b16 %v327, %v323
    %v396 = vpack.c.b16 %v328, %v324
    %v397 = vpack.c.b16 %v329, %v325
    %vm466 = vcmask 130048
    %v468 = vsel %vm466, %v123, 0
    %470 = vmatprep.subr.bf16.mxu0 %v331
    %471 = vmatpush1.bf16.msra.mxu0 %v330
    %472 = vmatprep.subr.bf16.mxu0 %v335
    %473 = vmatpush1.bf16.msra.mxu0 %v334
    %474 = vmatprep.subr.bf16.mxu0 %v339
    %475 = vmatpush1.bf16.msra.mxu0 %v338
    %476 = vmatprep.subr.bf16.mxu0 %v343
    %477 = vmatpush1.bf16.msra.mxu0 %v342
    %478 = vmatprep.subr.bf16.mxu0 %v347
    %479 = vmatpush1.bf16.msra.mxu0 %v346
    %480 = vmatprep.subr.bf16.mxu0 %v351
    %481 = vmatpush1.bf16.msra.mxu0 %v350
    %482 = vmatprep.subr.bf16.mxu0 %v355
    %483 = vmatpush1.bf16.msra.mxu0 %v354
    %484 = vmatprep.subr.bf16.mxu0 %v359
    %485 = vmatpush1.bf16.msra.mxu0 %v358
    %486 = vmatprep.subr.bf16.mxu0 %v363
    %487 = vmatpush1.bf16.msra.mxu0 %v362
    %488 = vmatprep.subr.bf16.mxu0 %v367
    %489 = vmatpush1.bf16.msra.mxu0 %v366
    %490 = vmatprep.subr.bf16.mxu0 %v371
    %491 = vmatpush1.bf16.msra.mxu0 %v370
    %492 = vmatprep.subr.bf16.mxu0 %v375
    %493 = vmatpush1.bf16.msra.mxu0 %v374
    %494 = vmatprep.subr.bf16.mxu0 %v379
    %495 = vmatpush1.bf16.msra.mxu0 %v378
    %496 = vmatprep.subr.bf16.mxu0 %v383
    %497 = vmatpush1.bf16.msra.mxu0 %v382
    %498 = vmatprep.subr.bf16.mxu0 %v387
    %499 = vmatpush1.bf16.msra.mxu0 %v386
    %500 = vmatprep.subr.bf16.mxu0 %v391
    %501 = vmatpush1.bf16.msra.mxu0 %v390
    %502 = vmatprep.mubr.bf16.mxu0 %v122
    %503 = vmatmul.mubr.bf16.gmra.mrb[0].mxu0 %v121
    %v504 = vpop.f32.mrb[0].mxu0
    %v505 = vadd.f32 0.0, %v504
    %v506 = vpop.f32.mrb[0].mxu0
    %v507 = vadd.f32 0.0, %v506
    %v508 = vpop.f32.mrb[0].mxu0
    %v509 = vpop.f32.mrb[0].mxu0
    %510 = vdwg.mxu0
    %511 = vmatprep.subr.bf16.mxu0 %v395
    %512 = vmatpush1.bf16.msra.mxu0 %v394
    %513 = vmatprep.subr.bf16.mxu0 0
    %514 = vmatpush1.bf16.msra.mxu0 0
    %515 = vmatprep.subr.bf16.mxu0 0
    %516 = vmatpush1.bf16.msra.mxu0 0
    %517 = vmatprep.subr.bf16.mxu0 0
    %518 = vmatpush1.bf16.msra.mxu0 0
    %519 = vmatprep.subr.bf16.mxu0 0
    %520 = vmatpush1.bf16.msra.mxu0 0
    %521 = vmatprep.subr.bf16.mxu0 0
    %522 = vmatpush1.bf16.msra.mxu0 0
    %523 = vmatprep.subr.bf16.mxu0 0
    %524 = vmatpush1.bf16.msra.mxu0 0
    %525 = vmatprep.subr.bf16.mxu0 0
    %526 = vmatpush1.bf16.msra.mxu0 0
    %527 = vmatprep.subr.bf16.mxu0 0
    %528 = vmatpush1.bf16.msra.mxu0 0
    %529 = vmatprep.subr.bf16.mxu0 0
    %530 = vmatpush1.bf16.msra.mxu0 0
    %531 = vmatprep.subr.bf16.mxu0 0
    %532 = vmatpush1.bf16.msra.mxu0 0
    %533 = vmatprep.subr.bf16.mxu0 0
    %534 = vmatpush1.bf16.msra.mxu0 0
    %535 = vmatprep.subr.bf16.mxu0 0
    %536 = vmatpush1.bf16.msra.mxu0 0
    %537 = vmatprep.subr.bf16.mxu0 0
    %538 = vmatpush1.bf16.msra.mxu0 0
    %539 = vmatprep.subr.bf16.mxu0 0
    %540 = vmatpush1.bf16.msra.mxu0 0
    %541 = vmatprep.subr.bf16.mxu0 0
    %542 = vmatpush1.bf16.msra.mxu0 0
    %543 = vmatprep.mubr.bf16.mxu0 0
    %544 = vmatmul.mubr.bf16.gmra.mrb[0].mxu0 %v468
    %v545 = vpop.f32.mrb[0].mxu0
    %v546 = vadd.f32 %v505, %v545
    %v547 = vpop.f32.mrb[0].mxu0
    %v548 = vadd.f32 %v507, %v547
    %v549 = vpop.f32.mrb[0].mxu0
    %v550 = vpop.f32.mrb[0].mxu0
    %551 = vdwg.mxu0
    %552 = vmatprep.subr.bf16.mxu0 %v333
    %553 = vmatpush1.bf16.msra.mxu0 %v332
    %554 = vmatprep.subr.bf16.mxu0 %v337
    %555 = vmatpush1.bf16.msra.mxu0 %v336
    %556 = vmatprep.subr.bf16.mxu0 %v341
    %557 = vmatpush1.bf16.msra.mxu0 %v340
    %558 = vmatprep.subr.bf16.mxu0 %v345
    %559 = vmatpush1.bf16.msra.mxu0 %v344
    %560 = vmatprep.subr.bf16.mxu0 %v349
    %561 = vmatpush1.bf16.msra.mxu0 %v348
    %562 = vmatprep.subr.bf16.mxu0 %v353
    %563 = vmatpush1.bf16.msra.mxu0 %v352
    %564 = vmatprep.subr.bf16.mxu0 %v357
    %565 = vmatpush1.bf16.msra.mxu0 %v356
    %566 = vmatprep.subr.bf16.mxu0 %v361
    %567 = vmatpush1.bf16.msra.mxu0 %v360
    %568 = vmatprep.subr.bf16.mxu0 %v365
    %569 = vmatpush1.bf16.msra.mxu0 %v364
    %570 = vmatprep.subr.bf16.mxu0 %v369
    %571 = vmatpush1.bf16.msra.mxu0 %v368
    %572 = vmatprep.subr.bf16.mxu0 %v373
    %573 = vmatpush1.bf16.msra.mxu0 %v372
    %574 = vmatprep.subr.bf16.mxu0 %v377
    %575 = vmatpush1.bf16.msra.mxu0 %v376
    %576 = vmatprep.subr.bf16.mxu0 %v381
    %577 = vmatpush1.bf16.msra.mxu0 %v380
    %578 = vmatprep.subr.bf16.mxu0 %v385
    %579 = vmatpush1.bf16.msra.mxu0 %v384
    %580 = vmatprep.subr.bf16.mxu0 %v389
    %581 = vmatpush1.bf16.msra.mxu0 %v388
    %582 = vmatprep.subr.bf16.mxu0 %v393
    %583 = vmatpush1.bf16.msra.mxu0 %v392
    %584 = vmatprep.mubr.bf16.mxu0 %v122
    %585 = vmatmul.mubr.bf16.gmra.mrb[0].mxu0 %v121
    %v586 = vpop.f32.mrb[0].mxu0
    %v587 = vadd.f32 0.0, %v586
    %v588 = vpop.f32.mrb[0].mxu0
    %v589 = vadd.f32 0.0, %v588
    %v590 = vpop.f32.mrb[0].mxu0
    %v591 = vpop.f32.mrb[0].mxu0
    %592 = vdwg.mxu0
    %593 = vmatprep.subr.bf16.mxu0 %v397
    %594 = vmatpush1.bf16.msra.mxu0 %v396
    %595 = vmatprep.subr.bf16.mxu0 0
    %596 = vmatpush1.bf16.msra.mxu0 0
    %597 = vmatprep.subr.bf16.mxu0 0
    %598 = vmatpush1.bf16.msra.mxu0 0
    %599 = vmatprep.subr.bf16.mxu0 0
    %600 = vmatpush1.bf16.msra.mxu0 0
    %601 = vmatprep.subr.bf16.mxu0 0
    %602 = vmatpush1.bf16.msra.mxu0 0
    %603 = vmatprep.subr.bf16.mxu0 0
    %604 = vmatpush1.bf16.msra.mxu0 0
    %605 = vmatprep.subr.bf16.mxu0 0
    %606 = vmatpush1.bf16.msra.mxu0 0
    %607 = vmatprep.subr.bf16.mxu0 0
    %608 = vmatpush1.bf16.msra.mxu0 0
    %609 = vmatprep.subr.bf16.mxu0 0
    %610 = vmatpush1.bf16.msra.mxu0 0
    %611 = vmatprep.subr.bf16.mxu0 0
    %612 = vmatpush1.bf16.msra.mxu0 0
    %613 = vmatprep.subr.bf16.mxu0 0
    %614 = vmatpush1.bf16.msra.mxu0 0
    %615 = vmatprep.subr.bf16.mxu0 0
    %616 = vmatpush1.bf16.msra.mxu0 0
    %617 = vmatprep.subr.bf16.mxu0 0
    %618 = vmatpush1.bf16.msra.mxu0 0
    %619 = vmatprep.subr.bf16.mxu0 0
    %620 = vmatpush1.bf16.msra.mxu0 0
    %621 = vmatprep.subr.bf16.mxu0 0
    %622 = vmatpush1.bf16.msra.mxu0 0
    %623 = vmatprep.subr.bf16.mxu0 0
    %624 = vmatpush1.bf16.msra.mxu0 0
    %625 = vmatprep.mubr.bf16.mxu0 0
    %626 = vmatmul.mubr.bf16.gmra.mrb[0].mxu0 %v468
    %v627 = vpop.f32.mrb[0].mxu0
    %v628 = vadd.f32 %v587, %v627
    %v629 = vpop.f32.mrb[0].mxu0
    %v630 = vadd.f32 %v589, %v629
    %v631 = vpop.f32.mrb[0].mxu0
    %v632 = vpop.f32.mrb[0].mxu0
    %633 = vdwg.mxu0
    %v634 = vmul.f32 %v546, 0.2
    %v635 = vmul.f32 %v548, 0.2
    %v636 = vmul.f32 %v628, 0.2
    %v637 = vmul.f32 %v630, 0.2
    %v638 = vmax.f32 %v546, %v634
    %v639 = vmax.f32 %v548, %v635
    %v640 = vmax.f32 %v628, %v636
    %v641 = vmax.f32 %v630, %v637
    %v642 = vpack.c.bf16 %v638, %v638
    %v643 = vpack.c.bf16 %v639, %v639
    %v644 = vpack.c.bf16 %v640, %v640
    %v645 = vpack.c.bf16 %v641, %v641
    %v646 = vld [vmem:[#allocation4] sm:$0xff]
    %v647 = vld [vmem:[#allocation4 + $0x8] sm:$0xff]
    %v648 = vld [vmem:[#allocation4 + $0x10] sm:$0xff]
    %v649 = vld [vmem:[#allocation4 + $0x18] sm:$0xff]
    %v650 = vld [vmem:[#allocation4 + $0x20] sm:$0xff]
    %v651 = vld [vmem:[#allocation4 + $0x28] sm:$0xff]
    %v652 = vld [vmem:[#allocation4 + $0x30] sm:$0xff]
    %v653 = vld [vmem:[#allocation4 + $0x38] sm:$0xff]
    %v654 = vld [vmem:[#allocation4 + $0x40] sm:$0xff]
    %v655 = vld [vmem:[#allocation4 + $0x48] sm:$0xff]
    %v656 = vld [vmem:[#allocation4 + $0x50] sm:$0xff]
    %v657 = vld [vmem:[#allocation4 + $0x58] sm:$0xff]
    %v658 = vld [vmem:[#allocation4 + $0x60] sm:$0xff]
    %v659 = vld [vmem:[#allocation4 + $0x68] sm:$0xff]
    %v660 = vld [vmem:[#allocation4 + $0x70] sm:$0xff]
    %v661 = vld [vmem:[#allocation4 + $0x78] sm:$0xff]
    %v662 = vld [vmem:[#allocation4 + $0x80] sm:$0xff]
    %v663 = vld [vmem:[#allocation4 + $0x88] sm:$0xff]
    %v664 = vld [vmem:[#allocation4 + $0x90] sm:$0xff]
    %v665 = vld [vmem:[#allocation4 + $0x98] sm:$0xff]
    %v666 = vld [vmem:[#allocation4 + $0xa0] sm:$0xff]
    %v667 = vld [vmem:[#allocation4 + $0xa8] sm:$0xff]
    %v668 = vld [vmem:[#allocation4 + $0xb0] sm:$0xff]
    %v669 = vld [vmem:[#allocation4 + $0xb8] sm:$0xff]
    %v670 = vld [vmem:[#allocation4 + $0xc0] sm:$0xff]
    %v671 = vld [vmem:[#allocation4 + $0xc8] sm:$0xff]
    %v672 = vld [vmem:[#allocation4 + $0xd0] sm:$0xff]
    %v673 = vld [vmem:[#allocation4 + $0xd8] sm:$0xff]
    %v674 = vld [vmem:[#allocation4 + $0xe0] sm:$0xff]
    %v675 = vld [vmem:[#allocation4 + $0xe8] sm:$0xff]
    %v676 = vld [vmem:[#allocation4 + $0xf0] sm:$0xff]
    %v677 = vld [vmem:[#allocation4 + $0xf8] sm:$0xff]
    %v678 = vld [vmem:[#allocation4 + $0x100] sm:$0xff]
    %v679 = vld [vmem:[#allocation4 + $0x108] sm:$0xff]
    %v680 = vld [vmem:[#allocation4 + $0x110] sm:$0xff]
    %v681 = vld [vmem:[#allocation4 + $0x118] sm:$0xff]
    %v682 = vld [vmem:[#allocation4 + $0x120] sm:$0xff]
    %v683 = vld [vmem:[#allocation4 + $0x128] sm:$0xff]
    %v684 = vld [vmem:[#allocation4 + $0x130] sm:$0xff]
    %v685 = vld [vmem:[#allocation4 + $0x138] sm:$0xff]
    %v686 = vld [vmem:[#allocation4 + $0x140] sm:$0xff]
    %v687 = vld [vmem:[#allocation4 + $0x148] sm:$0xff]
    %v688 = vld [vmem:[#allocation4 + $0x150] sm:$0xff]
    %v689 = vld [vmem:[#allocation4 + $0x158] sm:$0xff]
    %v690 = vld [vmem:[#allocation4 + $0x160] sm:$0xff]
    %v691 = vld [vmem:[#allocation4 + $0x168] sm:$0xff]
    %v692 = vld [vmem:[#allocation4 + $0x170] sm:$0xff]
    %v693 = vld [vmem:[#allocation4 + $0x178] sm:$0xff]
    %v694 = vld [vmem:[#allocation4 + $0x180] sm:$0xff]
    %v695 = vld [vmem:[#allocation4 + $0x188] sm:$0xff]
    %v696 = vld [vmem:[#allocation4 + $0x190] sm:$0xff]
    %v697 = vld [vmem:[#allocation4 + $0x198] sm:$0xff]
    %v698 = vld [vmem:[#allocation4 + $0x1a0] sm:$0xff]
    %v699 = vld [vmem:[#allocation4 + $0x1a8] sm:$0xff]
    %v700 = vld [vmem:[#allocation4 + $0x1b0] sm:$0xff]
    %v701 = vld [vmem:[#allocation4 + $0x1b8] sm:$0xff]
    %v702 = vld [vmem:[#allocation4 + $0x1c0] sm:$0xff]
    %v703 = vld [vmem:[#allocation4 + $0x1c8] sm:$0xff]
    %v704 = vld [vmem:[#allocation4 + $0x1d0] sm:$0xff]
    %v705 = vld [vmem:[#allocation4 + $0x1d8] sm:$0xff]
    %v706 = vld [vmem:[#allocation4 + $0x1e0] sm:$0xff]
    %v707 = vld [vmem:[#allocation4 + $0x1e8] sm:$0xff]
    %v708 = vld [vmem:[#allocation4 + $0x1f0] sm:$0xff]
    %v709 = vld [vmem:[#allocation4 + $0x1f8] sm:$0xff]
    %v710 = vld [vmem:[%s3] ss:$4 sm:$0x3]
    %v712 = vlaneseq
    %v713 = vshrl.u32 %v712, 7
    %v714 = vsub.s32 0, %v713
    %v715 = vrot.slane %v710, %v714
    %v716 = vlaneseq
    %v717 = vshrl.u32 %v716, 7
    %v718 = vsub.s32 1, %v717
    %v719 = vrot.slane %v710, %v718
    %v786 = vunpack.c.l.b16 %v646
    %v787 = vunpack.c.h.b16 %v646
    %v788 = vunpack.c.l.b16 %v647
    %v789 = vunpack.c.h.b16 %v647
    %v790 = vunpack.c.l.b16 %v648
    %v791 = vunpack.c.h.b16 %v648
    %v792 = vunpack.c.l.b16 %v649
    %v793 = vunpack.c.h.b16 %v649
    %v794 = vunpack.c.l.b16 %v650
    %v795 = vunpack.c.h.b16 %v650
    %v796 = vunpack.c.l.b16 %v651
    %v797 = vunpack.c.h.b16 %v651
    %v798 = vunpack.c.l.b16 %v652
    %v799 = vunpack.c.h.b16 %v652
    %v800 = vunpack.c.l.b16 %v653
    %v801 = vunpack.c.h.b16 %v653
    %v802 = vunpack.c.l.b16 %v654
    %v803 = vunpack.c.h.b16 %v654
    %v804 = vunpack.c.l.b16 %v655
    %v805 = vunpack.c.h.b16 %v655
    %v806 = vunpack.c.l.b16 %v656
    %v807 = vunpack.c.h.b16 %v656
    %v808 = vunpack.c.l.b16 %v657
    %v809 = vunpack.c.h.b16 %v657
    %v810 = vunpack.c.l.b16 %v658
    %v811 = vunpack.c.h.b16 %v658
    %v812 = vunpack.c.l.b16 %v659
    %v813 = vunpack.c.h.b16 %v659
    %v814 = vunpack.c.l.b16 %v660
    %v815 = vunpack.c.h.b16 %v660
    %v816 = vunpack.c.l.b16 %v661
    %v817 = vunpack.c.h.b16 %v661
    %v818 = vunpack.c.l.b16 %v662
    %v819 = vunpack.c.h.b16 %v662
    %v820 = vunpack.c.l.b16 %v663
    %v821 = vunpack.c.h.b16 %v663
    %v822 = vunpack.c.l.b16 %v664
    %v823 = vunpack.c.h.b16 %v664
    %v824 = vunpack.c.l.b16 %v665
    %v825 = vunpack.c.h.b16 %v665
    %v826 = vunpack.c.l.b16 %v666
    %v827 = vunpack.c.h.b16 %v666
    %v828 = vunpack.c.l.b16 %v667
    %v829 = vunpack.c.h.b16 %v667
    %v830 = vunpack.c.l.b16 %v668
    %v831 = vunpack.c.h.b16 %v668
    %v832 = vunpack.c.l.b16 %v669
    %v833 = vunpack.c.h.b16 %v669
    %v834 = vunpack.c.l.b16 %v670
    %v835 = vunpack.c.h.b16 %v670
    %v836 = vunpack.c.l.b16 %v671
    %v837 = vunpack.c.h.b16 %v671
    %v838 = vunpack.c.l.b16 %v672
    %v839 = vunpack.c.h.b16 %v672
    %v840 = vunpack.c.l.b16 %v673
    %v841 = vunpack.c.h.b16 %v673
    %v842 = vunpack.c.l.b16 %v674
    %v843 = vunpack.c.h.b16 %v674
    %v844 = vunpack.c.l.b16 %v675
    %v845 = vunpack.c.h.b16 %v675
    %v846 = vunpack.c.l.b16 %v676
    %v847 = vunpack.c.h.b16 %v676
    %v848 = vunpack.c.l.b16 %v677
    %v849 = vunpack.c.h.b16 %v677
    %v850 = vunpack.c.l.b16 %v678
    %v851 = vunpack.c.h.b16 %v678
    %v852 = vunpack.c.l.b16 %v679
    %v853 = vunpack.c.h.b16 %v679
    %v854 = vunpack.c.l.b16 %v680
    %v855 = vunpack.c.h.b16 %v680
    %v856 = vunpack.c.l.b16 %v681
    %v857 = vunpack.c.h.b16 %v681
    %v858 = vunpack.c.l.b16 %v682
    %v859 = vunpack.c.h.b16 %v682
    %v860 = vunpack.c.l.b16 %v683
    %v861 = vunpack.c.h.b16 %v683
    %v862 = vunpack.c.l.b16 %v684
    %v863 = vunpack.c.h.b16 %v684
    %v864 = vunpack.c.l.b16 %v685
    %v865 = vunpack.c.h.b16 %v685
    %v866 = vunpack.c.l.b16 %v686
    %v867 = vunpack.c.h.b16 %v686
    %v868 = vunpack.c.l.b16 %v687
    %v869 = vunpack.c.h.b16 %v687
    %v870 = vunpack.c.l.b16 %v688
    %v871 = vunpack.c.h.b16 %v688
    %v872 = vunpack.c.l.b16 %v689
    %v873 = vunpack.c.h.b16 %v689
    %v874 = vunpack.c.l.b16 %v690
    %v875 = vunpack.c.h.b16 %v690
    %v876 = vunpack.c.l.b16 %v691
    %v877 = vunpack.c.h.b16 %v691
    %v878 = vunpack.c.l.b16 %v692
    %v879 = vunpack.c.h.b16 %v692
    %v880 = vunpack.c.l.b16 %v693
    %v881 = vunpack.c.h.b16 %v693
    %v882 = vunpack.c.l.b16 %v694
    %v883 = vunpack.c.h.b16 %v694
    %v884 = vunpack.c.l.b16 %v695
    %v885 = vunpack.c.h.b16 %v695
    %v886 = vunpack.c.l.b16 %v696
    %v887 = vunpack.c.h.b16 %v696
    %v888 = vunpack.c.l.b16 %v697
    %v889 = vunpack.c.h.b16 %v697
    %v890 = vunpack.c.l.b16 %v698
    %v891 = vunpack.c.h.b16 %v698
    %v892 = vunpack.c.l.b16 %v699
    %v893 = vunpack.c.h.b16 %v699
    %v894 = vunpack.c.l.b16 %v700
    %v895 = vunpack.c.h.b16 %v700
    %v896 = vunpack.c.l.b16 %v701
    %v897 = vunpack.c.h.b16 %v701
    %v898 = vunpack.c.l.b16 %v702
    %v899 = vunpack.c.h.b16 %v702
    %v900 = vunpack.c.l.b16 %v703
    %v901 = vunpack.c.h.b16 %v703
    %v902 = vunpack.c.l.b16 %v704
    %v903 = vunpack.c.h.b16 %v704
    %v904 = vunpack.c.l.b16 %v705
    %v905 = vunpack.c.h.b16 %v705
    %v906 = vunpack.c.l.b16 %v706
    %v907 = vunpack.c.h.b16 %v706
    %v908 = vunpack.c.l.b16 %v707
    %v909 = vunpack.c.h.b16 %v707
    %v910 = vunpack.c.l.b16 %v708
    %v911 = vunpack.c.h.b16 %v708
    %v912 = vunpack.c.l.b16 %v709
    %v913 = vunpack.c.h.b16 %v709
    %v914 = vpack.c.b16 %v788, %v786
    %v915 = vpack.c.b16 %v789, %v787
    %v916 = vpack.c.b16 %v792, %v790
    %v917 = vpack.c.b16 %v793, %v791
    %v918 = vpack.c.b16 %v796, %v794
    %v919 = vpack.c.b16 %v797, %v795
    %v920 = vpack.c.b16 %v800, %v798
    %v921 = vpack.c.b16 %v801, %v799
    %v922 = vpack.c.b16 %v804, %v802
    %v923 = vpack.c.b16 %v805, %v803
    %v924 = vpack.c.b16 %v808, %v806
    %v925 = vpack.c.b16 %v809, %v807
    %v926 = vpack.c.b16 %v812, %v810
    %v927 = vpack.c.b16 %v813, %v811
    %v928 = vpack.c.b16 %v816, %v814
    %v929 = vpack.c.b16 %v817, %v815
    %v930 = vpack.c.b16 %v820, %v818
    %v931 = vpack.c.b16 %v821, %v819
    %v932 = vpack.c.b16 %v824, %v822
    %v933 = vpack.c.b16 %v825, %v823
    %v934 = vpack.c.b16 %v828, %v826
    %v935 = vpack.c.b16 %v829, %v827
    %v936 = vpack.c.b16 %v832, %v830
    %v937 = vpack.c.b16 %v833, %v831
    %v938 = vpack.c.b16 %v836, %v834
    %v939 = vpack.c.b16 %v837, %v835
    %v940 = vpack.c.b16 %v840, %v838
    %v941 = vpack.c.b16 %v841, %v839
    %v942 = vpack.c.b16 %v844, %v842
    %v943 = vpack.c.b16 %v845, %v843
    %v944 = vpack.c.b16 %v848, %v846
    %v945 = vpack.c.b16 %v849, %v847
    %v946 = vpack.c.b16 %v852, %v850
    %v947 = vpack.c.b16 %v853, %v851
    %v948 = vpack.c.b16 %v856, %v854
    %v949 = vpack.c.b16 %v857, %v855
    %v950 = vpack.c.b16 %v860, %v858
    %v951 = vpack.c.b16 %v861, %v859
    %v952 = vpack.c.b16 %v864, %v862
    %v953 = vpack.c.b16 %v865, %v863
    %v954 = vpack.c.b16 %v868, %v866
    %v955 = vpack.c.b16 %v869, %v867
    %v956 = vpack.c.b16 %v872, %v870
    %v957 = vpack.c.b16 %v873, %v871
    %v958 = vpack.c.b16 %v876, %v874
    %v959 = vpack.c.b16 %v877, %v875
    %v960 = vpack.c.b16 %v880, %v878
    %v961 = vpack.c.b16 %v881, %v879
    %v962 = vpack.c.b16 %v884, %v882
    %v963 = vpack.c.b16 %v885, %v883
    %v964 = vpack.c.b16 %v888, %v886
    %v965 = vpack.c.b16 %v889, %v887
    %v966 = vpack.c.b16 %v892, %v890
    %v967 = vpack.c.b16 %v893, %v891
    %v968 = vpack.c.b16 %v896, %v894
    %v969 = vpack.c.b16 %v897, %v895
    %v970 = vpack.c.b16 %v900, %v898
    %v971 = vpack.c.b16 %v901, %v899
    %v972 = vpack.c.b16 %v904, %v902
    %v973 = vpack.c.b16 %v905, %v903
    %v974 = vpack.c.b16 %v908, %v906
    %v975 = vpack.c.b16 %v909, %v907
    %v976 = vpack.c.b16 %v912, %v910
    %v977 = vpack.c.b16 %v913, %v911
    %1042 = vmatprep.subr.bf16.mxu0 %v915
    %1043 = vmatpush1.bf16.msra.mxu0 %v914
    %1044 = vmatprep.subr.bf16.mxu0 %v917
    %1045 = vmatpush1.bf16.msra.mxu0 %v916
    %1046 = vmatprep.subr.bf16.mxu0 %v919
    %1047 = vmatpush1.bf16.msra.mxu0 %v918
    %1048 = vmatprep.subr.bf16.mxu0 %v921
    %1049 = vmatpush1.bf16.msra.mxu0 %v920
    %1050 = vmatprep.subr.bf16.mxu0 %v923
    %1051 = vmatpush1.bf16.msra.mxu0 %v922
    %1052 = vmatprep.subr.bf16.mxu0 %v925
    %1053 = vmatpush1.bf16.msra.mxu0 %v924
    %1054 = vmatprep.subr.bf16.mxu0 %v927
    %1055 = vmatpush1.bf16.msra.mxu0 %v926
    %1056 = vmatprep.subr.bf16.mxu0 %v929
    %1057 = vmatpush1.bf16.msra.mxu0 %v928
    %1058 = vmatprep.subr.bf16.mxu0 %v931
    %1059 = vmatpush1.bf16.msra.mxu0 %v930
    %1060 = vmatprep.subr.bf16.mxu0 %v933
    %1061 = vmatpush1.bf16.msra.mxu0 %v932
    %1062 = vmatprep.subr.bf16.mxu0 %v935
    %1063 = vmatpush1.bf16.msra.mxu0 %v934
    %1064 = vmatprep.subr.bf16.mxu0 %v937
    %1065 = vmatpush1.bf16.msra.mxu0 %v936
    %1066 = vmatprep.subr.bf16.mxu0 %v939
    %1067 = vmatpush1.bf16.msra.mxu0 %v938
    %1068 = vmatprep.subr.bf16.mxu0 %v941
    %1069 = vmatpush1.bf16.msra.mxu0 %v940
    %1070 = vmatprep.subr.bf16.mxu0 %v943
    %1071 = vmatpush1.bf16.msra.mxu0 %v942
    %1072 = vmatprep.subr.bf16.mxu0 %v945
    %1073 = vmatpush1.bf16.msra.mxu0 %v944
    %1074 = vmatprep.mubr.bf16.mxu0 %v643
    %1075 = vmatmul.mubr.bf16.gmra.mrb[0].mxu0 %v642
    %v1076 = vpop.f32.mrb[0].mxu0
    %v1077 = vadd.f32 %v715, %v1076
    %v1078 = vpop.f32.mrb[0].mxu0
    %v1079 = vadd.f32 %v719, %v1078
    %v1080 = vpop.f32.mrb[0].mxu0
    %v1081 = vpop.f32.mrb[0].mxu0
    %1082 = vdwg.mxu0
    %1083 = vmatprep.subr.bf16.mxu0 %v947
    %1084 = vmatpush1.bf16.msra.mxu0 %v946
    %1085 = vmatprep.subr.bf16.mxu0 %v949
    %1086 = vmatpush1.bf16.msra.mxu0 %v948
    %1087 = vmatprep.subr.bf16.mxu0 %v951
    %1088 = vmatpush1.bf16.msra.mxu0 %v950
    %1089 = vmatprep.subr.bf16.mxu0 %v953
    %1090 = vmatpush1.bf16.msra.mxu0 %v952
    %1091 = vmatprep.subr.bf16.mxu0 %v955
    %1092 = vmatpush1.bf16.msra.mxu0 %v954
    %1093 = vmatprep.subr.bf16.mxu0 %v957
    %1094 = vmatpush1.bf16.msra.mxu0 %v956
    %1095 = vmatprep.subr.bf16.mxu0 %v959
    %1096 = vmatpush1.bf16.msra.mxu0 %v958
    %1097 = vmatprep.subr.bf16.mxu0 %v961
    %1098 = vmatpush1.bf16.msra.mxu0 %v960
    %1099 = vmatprep.subr.bf16.mxu0 %v963
    %1100 = vmatpush1.bf16.msra.mxu0 %v962
    %1101 = vmatprep.subr.bf16.mxu0 %v965
    %1102 = vmatpush1.bf16.msra.mxu0 %v964
    %1103 = vmatprep.subr.bf16.mxu0 %v967
    %1104 = vmatpush1.bf16.msra.mxu0 %v966
    %1105 = vmatprep.subr.bf16.mxu0 %v969
    %1106 = vmatpush1.bf16.msra.mxu0 %v968
    %1107 = vmatprep.subr.bf16.mxu0 %v971
    %1108 = vmatpush1.bf16.msra.mxu0 %v970
    %1109 = vmatprep.subr.bf16.mxu0 %v973
    %1110 = vmatpush1.bf16.msra.mxu0 %v972
    %1111 = vmatprep.subr.bf16.mxu0 %v975
    %1112 = vmatpush1.bf16.msra.mxu0 %v974
    %1113 = vmatprep.subr.bf16.mxu0 %v977
    %1114 = vmatpush1.bf16.msra.mxu0 %v976
    %1115 = vmatprep.mubr.bf16.mxu0 %v645
    %1116 = vmatmul.mubr.bf16.gmra.mrb[0].mxu0 %v644
    %v1117 = vpop.f32.mrb[0].mxu0
    %v1118 = vadd.f32 %v1077, %v1117
    %v1119 = vpop.f32.mrb[0].mxu0
    %v1120 = vadd.f32 %v1079, %v1119
    %v1121 = vpop.f32.mrb[0].mxu0
    %v1122 = vpop.f32.mrb[0].mxu0
    %1123 = vdwg.mxu0
    %v1124 = vmul.f32 %v1118, 0.2
    %v1125 = vmul.f32 %v1120, 0.2
    %v1126 = vmax.f32 %v1118, %v1124
    %v1127 = vmax.f32 %v1120, %v1125
    %s1128 = scalar_lea.vmem %s3, 1
    %v1129 = vld [vmem:[%s1128] ss:$4 sm:$0x3]
    %v1130 = vld [vmem:[%s3 + $0x2] sm:$0x1]
    %v1132 = vlaneseq
    %v1133 = vshrl.u32 %v1132, 7
    %v1134 = vsub.s32 0, %v1133
    %v1135 = vrot.slane %v1129, %v1134
    %v1136 = vlaneseq
    %v1137 = vshrl.u32 %v1136, 7
    %v1138 = vsub.s32 1, %v1137
    %v1139 = vrot.slane %v1129, %v1138
    %v1142 = vmul.f32 %v1126, %v1135
    %v1143 = vmul.f32 %v1127, %v1139
    %v1144 = vadd.f32 %v1142, %v1143
    %1145 = vadd.xlane.f32.xlu0 %v1144
    %v1146 = vpop.xlane.xlu0 %1145
    %v1147 = vlaneseq
    %v1148 = vshrl.u32 %v1147, 7
    %v1149 = vsub.s32 0, %v1148
    %v1150 = vrot.slane %v1130, %v1149
    %v1151 = vadd.f32 %v1146, %v1150
    %vm1152 = vcmask 7168
    %1153 = vst.msk [vmem:[%s4] sm:$0xff] %vm1152, %v1151
    // Predicated region
    $region26: #{discriminator_apply.1} parent=1 // pred_check
      _
    $region27: #{discriminator_apply.1} parent=1 // pred_check_branch
      %1155 = sbr.rel (0) target = $region29
    $region28: #{discriminator_apply.1} parent=1 // pred_region
      _
    $region29: #{discriminator_apply.1} parent=1 // pred_fallthru
      _
    // Predicated region
    $region30: #{discriminator_apply.1} parent=1 // pred_check
      _
    $region31: #{discriminator_apply.1} parent=1 // pred_check_branch
      %1157 = sbr.rel (0) target = $region33
    $region32: #{discriminator_apply.1} parent=1 // pred_region
      _
    $region33: #{discriminator_apply.1} parent=1 // pred_fallthru
      _
    %1158 = vsyncpa [#allocation3], 1
    %1159 = vsyncpa [#allocation5], 1

</llo_original>
